<compile_context>
chip_gen: v7x
topology: tpu7x:2x2x1
jax: 0.10.0
libtpu: 0.0.40
codegen_flags: <defaults>
</compile_context>

<pallas_src>
import functools

import jax
import jax.numpy as jnp
from jax.experimental import pallas as pl
from jax.experimental.pallas import tpu as pltpu


def resnet_classifier_kernel(x_ref, wb_ref, bb_ref, wc_ref, bc_ref, out_ref, acc_ref,
                             *, hw_total):
    """GAP (accumulated) -> Linear+ReLU (backbone stand-in) -> Linear -> Sigmoid.

    x_ref  : (TN, C, TS)  activation tile (bf16 or f32)
    wb_ref : (C, F)  f32  backbone projection weight
    bb_ref : (1, F)  f32  backbone projection bias
    wc_ref : (1, F)  f32  classifier weight (nn.Linear(F, 1).weight layout)
    bc_ref : (1, 1)  f32  classifier bias
    out_ref: (TN, 1) f32  sigmoid probabilities
    acc_ref: (TN, C) f32  spatial-sum accumulator (VMEM scratch)
    """
    s = pl.program_id(1)

    @pl.when(s == 0)
    def _():
        acc_ref[...] = jnp.zeros_like(acc_ref)

    # Cast immediately after load; accumulate the spatial sum in f32.
    x = x_ref[...].astype(jnp.float32)
    acc_ref[...] += jnp.sum(x, axis=-1)

    @pl.when(s == pl.num_programs(1) - 1)
    def _():
        gap = acc_ref[...] * (1.0 / hw_total)                                   # (TN, C)
        feat = jnp.dot(gap, wb_ref[...], preferred_element_type=jnp.float32)
        feat = jnp.maximum(feat + bb_ref[...], 0.0)                             # (TN, F)
        # Classifier head: avoid a lane-width-1 MXU matmul; VPU mul + lane reduce instead.
        logit = jnp.sum(feat * wc_ref[...], axis=-1, keepdims=True) + bc_ref[...]
        out_ref[...] = jax.nn.sigmoid(logit)


def _pick_batch_tile(n):
    # Full N when small (full-dim block is always legal); otherwise multiples of 8.
    return n if n <= 8 else 8


def _pick_spatial_tile(hw, bytes_per_spatial, target_bytes=4 * 1024 * 1024):
    """Largest lane-aligned spatial tile that evenly divides hw and fits the byte budget."""
    if hw % 128 != 0:
        return hw  # full spatial extent (BlockSpec allows full-dim blocks, e.g. HW=49)
    for cand in (2048, 1024, 512, 256, 128):
        if hw % cand == 0 and cand * bytes_per_spatial <= target_bytes:
            return cand
    return 128


def resnet_classifier_forward(x, params, eval=True, compute_dtype=jnp.bfloat16,
                              spatial_tile=None):
    """x: (N, C, H, W) float (NCHW, PyTorch convention). Returns (N, 1) f32 probabilities."""
    # Only the eval forward path is supported in-kernel (no random augmentation).
    del eval
    N, C, H, W = x.shape
    HW = H * W
    wb = params["wb"].astype(jnp.float32)
    bb = params["bb"].astype(jnp.float32).reshape(1, -1)
    wc = params["wc"].astype(jnp.float32).reshape(1, -1)
    bc = params["bc"].astype(jnp.float32).reshape(1, 1)
    F = wb.shape[1]

    x_flat = x.reshape(N, C, HW).astype(compute_dtype)
    itemsize = jnp.dtype(compute_dtype).itemsize

    # Batch tiling (ragged N -> zero-pad and slice the output afterwards).
    TN = _pick_batch_tile(N)
    n_pad = (-N) % TN
    if n_pad:
        x_flat = jnp.pad(x_flat, ((0, n_pad), (0, 0), (0, 0)))
    NP = N + n_pad

    # Spatial tiling: lane-aligned, evenly divides HW (or the full HW when not 128-aligned).
    TS = spatial_tile if spatial_tile is not None else _pick_spatial_tile(HW, TN * C * itemsize)
    assert HW % TS == 0 and (TS == HW or TS % 128 == 0)

    grid = (NP // TN, HW // TS)

    # Rough VMEM budget: double-buffered x stream + resident weights + scratch + output.
    est = (2 * TN * C * TS * itemsize + (C * F + 2 * F + 1) * 4
           + TN * C * 4 + 2 * TN * 4)
    vmem_limit = int(min(max(4 * est, 32 * 1024 * 1024), 48 * 1024 * 1024))

    kernel = functools.partial(resnet_classifier_kernel, hw_total=float(HW))

    out = pl.pallas_call(
        kernel,
        out_shape=jax.ShapeDtypeStruct((NP, 1), jnp.float32),
        grid_spec=pltpu.PrefetchScalarGridSpec(
            num_scalar_prefetch=0,
            grid=grid,
            in_specs=[
                pl.BlockSpec((TN, C, TS), lambda n, s: (n, 0, s)),   # x: streamed/pipelined
                pl.BlockSpec((C, F), lambda n, s: (0, 0)),           # wb: VMEM-resident
                pl.BlockSpec((1, F), lambda n, s: (0, 0)),           # bb: VMEM-resident
                pl.BlockSpec((1, F), lambda n, s: (0, 0)),           # wc: VMEM-resident
                pl.BlockSpec((1, 1), lambda n, s: (0, 0)),           # bc: VMEM-resident
            ],
            out_specs=pl.BlockSpec((TN, 1), lambda n, s: (n, 0)),
            scratch_shapes=[pltpu.VMEM((TN, C), jnp.float32)],
        ),
        compiler_params=pltpu.CompilerParams(
            dimension_semantics=("parallel", "arbitrary"),
            vmem_limit_bytes=vmem_limit,
        ),
    )(x_flat, wb, bb, wc, bc)
    return out[:N]


def init_params(key, in_channels, feature_size):
    k_wb, k_wc = jax.random.split(key)
    # Backbone stand-in params (deterministic synthetic init).
    wb = jax.random.normal(k_wb, (in_channels, feature_size), jnp.float32) * 0.1
    bb = jnp.zeros((1, feature_size), jnp.float32)
    # Classifier params: weight ~ N(0, 0.01), bias = 0 (matches the PyTorch __init__).
    wc = jax.random.normal(k_wc, (1, feature_size), jnp.float32) * 0.01
    bc = jnp.zeros((1, 1), jnp.float32)
    return {"wb": wb, "bb": bb, "wc": wc, "bc": bc}


def reference_forward(x, params):
    """Pure-JAX reference for correctness checking."""
    N, C, H, W = x.shape
    gap = jnp.mean(x.reshape(N, C, H * W).astype(jnp.float32), axis=-1)
    feat = jnp.maximum(gap @ params["wb"] + params["bb"], 0.0)
    logit = jnp.sum(feat * params["wc"], axis=-1, keepdims=True) + params["bc"]
    return jax.nn.sigmoid(logit)


if __name__ == "__main__":
    key = jax.random.PRNGKey(0)
    k_x, k_p, k_x2, k_p2 = jax.random.split(key, 4)

    # Case 1: small NCHW input, f32 path -> strict check against the pure-JAX reference.
    N, C, H, W, F = 2, 4, 16, 16, 32
    x = jax.random.normal(k_x, (N, C, H, W), jnp.float32)
    params = init_params(k_p, C, F)
    ref = reference_forward(x, params)

    out_f32 = jax.block_until_ready(
        resnet_classifier_forward(x, params, eval=True, compute_dtype=jnp.float32))
    assert out_f32.shape == (N, 1)
    assert jnp.allclose(out_f32, ref, atol=1e-5, rtol=1e-5)

    # Case 2: default bf16 activation path (halves HBM traffic) -> loose tolerance.
    out_bf16 = jax.block_until_ready(resnet_classifier_forward(x, params, eval=True))
    assert out_bf16.shape == (N, 1)
    assert jnp.allclose(out_bf16, ref, atol=2e-2, rtol=2e-2)

    # Case 3: ragged batch (N=10 -> TN=8, padded to 16) + multi-step spatial accumulation
    # (HW=256, TS=128 -> grid=(2, 2)), f32 strict check.
    N2, C2, H2, W2, F2 = 10, 8, 16, 16, 32
    x2 = jax.random.normal(k_x2, (N2, C2, H2, W2), jnp.float32)
    params2 = init_params(k_p2, C2, F2)
    ref2 = reference_forward(x2, params2)
    out2 = jax.block_until_ready(
        resnet_classifier_forward(x2, params2, eval=True,
                                  compute_dtype=jnp.float32, spatial_tile=128))
    assert out2.shape == (N2, 1)
    assert jnp.allclose(out2, ref2, atol=1e-5, rtol=1e-5)

    print("KERNEL_OK")
</pallas_src>

<mosaic_0001>
module attributes {stable_mosaic.version = 11 : i64} {
  func.func @resnet_classifier_kernel(%arg0: i32, %arg1: i32, %arg2: memref<2x4x256xf32, #tpu.memory_space<vmem>>, %arg3: memref<4x32xf32, #tpu.memory_space<vmem>>, %arg4: memref<1x32xf32, #tpu.memory_space<vmem>>, %arg5: memref<1x32xf32, #tpu.memory_space<vmem>>, %arg6: memref<1x1xf32, #tpu.memory_space<vmem>>, %arg7: memref<2x1xf32, #tpu.memory_space<vmem>>, %arg8: memref<2x4xf32, #tpu.memory_space<vmem>>) attributes {dimension_semantics = [#tpu.dimension_semantics<parallel>, #tpu.dimension_semantics<arbitrary>], iteration_bounds = array<i64: 1, 1>, scalar_prefetch = 0 : i64, scratch_operands = 1 : i64, tpu.core_type = #tpu.core_type<tc>, window_params = [{transform_indices = @transform_0, window_bounds = array<i64: 2, 4, 256>}, {pipeline_mode = #tpu.pipeline_mode<synchronous>, transform_indices = @transform_1, window_bounds = array<i64: 4, 32>}, {pipeline_mode = #tpu.pipeline_mode<synchronous>, transform_indices = @transform_2, window_bounds = array<i64: 1, 32>}, {pipeline_mode = #tpu.pipeline_mode<synchronous>, transform_indices = @transform_3, window_bounds = array<i64: 1, 32>}, {pipeline_mode = #tpu.pipeline_mode<synchronous>, transform_indices = @transform_4, window_bounds = array<i64: 1, 1>}, {transform_indices = @transform_5, window_bounds = array<i64: 2, 1>}]} {
    %c0_i32 = arith.constant 0 : i32
    %0 = arith.cmpi eq, %arg1, %c0_i32 : i32
    %1 = arith.extui %0 : i1 to i32
    %c0_i32_0 = arith.constant 0 : i32
    %2 = arith.cmpi ne, %1, %c0_i32_0 : i32
    scf.if %2 {
      %cst_9 = arith.constant 0.000000e+00 : f32
      %11 = vector.broadcast %cst_9 : f32 to vector<2x4xf32>
      %c0_10 = arith.constant 0 : index
      %c0_11 = arith.constant 0 : index
      %12 = vector.load %arg8[%c0_10, %c0_11] : memref<2x4xf32, #tpu.memory_space<vmem>>, vector<2x4xf32>
      tpu.vector_store %arg8[%c0_10, %c0_11], %11 {strides = array<i32>} : memref<2x4xf32, #tpu.memory_space<vmem>>, vector<2x4xf32>,
    } else {
    }
    %c0 = arith.constant 0 : index
    %c0_1 = arith.constant 0 : index
    %c0_2 = arith.constant 0 : index
    %3 = vector.load %arg2[%c0, %c0_1, %c0_2] : memref<2x4x256xf32, #tpu.memory_space<vmem>>, vector<2x4x256xf32>
    %c0_3 = arith.constant 0 : index
    %c0_4 = arith.constant 0 : index
    %4 = vector.load %arg8[%c0_3, %c0_4] : memref<2x4xf32, #tpu.memory_space<vmem>>, vector<2x4xf32>
    %cst = arith.constant dense<0.000000e+00> : vector<2x4xf32>
    %5 = vector.multi_reduction <add>, %3, %cst [2] : vector<2x4x256xf32> to vector<2x4xf32>
    %6 = arith.addf %4, %5 : vector<2x4xf32>
    %c0_5 = arith.constant 0 : index
    %c0_6 = arith.constant 0 : index
    %7 = vector.load %arg8[%c0_5, %c0_6] : memref<2x4xf32, #tpu.memory_space<vmem>>, vector<2x4xf32>
    tpu.vector_store %arg8[%c0_5, %c0_6], %6 {strides = array<i32>} : memref<2x4xf32, #tpu.memory_space<vmem>>, vector<2x4xf32>,
    %c0_i32_7 = arith.constant 0 : i32
    %8 = arith.cmpi eq, %arg1, %c0_i32_7 : i32
    %9 = arith.extui %8 : i1 to i32
    %c0_i32_8 = arith.constant 0 : i32
    %10 = arith.cmpi ne, %9, %c0_i32_8 : i32
    scf.if %10 {
      %c0_9 = arith.constant 0 : index
      %c0_10 = arith.constant 0 : index
      %11 = vector.load %arg8[%c0_9, %c0_10] : memref<2x4xf32, #tpu.memory_space<vmem>>, vector<2x4xf32>
      %cst_11 = arith.constant 3.906250e-03 : f32
      %12 = vector.broadcast %cst_11 : f32 to vector<2x4xf32>
      %13 = arith.mulf %11, %12 : vector<2x4xf32>
      %c0_12 = arith.constant 0 : index
      %c0_13 = arith.constant 0 : index
      %14 = vector.load %arg3[%c0_12, %c0_13] : memref<4x32xf32, #tpu.memory_space<vmem>>, vector<4x32xf32>
      %cst_14 = arith.constant dense<0.000000e+00> : vector<2x32xf32>
      %15 = tpu.matmul %13, %14, %cst_14 {dimension_numbers = #tpu.dot_dimension_numbers<[1], [0], [0], [1], [0, 0, 1, 1], [], []>} : vector<2x4xf32>, vector<4x32xf32>, vector<2x32xf32> -> vector<2x32xf32>
      %c0_15 = arith.constant 0 : index
      %c0_16 = arith.constant 0 : index
      %16 = vector.load %arg4[%c0_15, %c0_16] : memref<1x32xf32, #tpu.memory_space<vmem>>, vector<1x32xf32>
      %17 = vector.broadcast %16 : vector<1x32xf32> to vector<2x32xf32>
      %18 = arith.addf %15, %17 : vector<2x32xf32>
      %cst_17 = arith.constant 0.000000e+00 : f32
      %19 = vector.broadcast %cst_17 : f32 to vector<2x32xf32>
      %20 = arith.maximumf %18, %19 : vector<2x32xf32>
      %c0_18 = arith.constant 0 : index
      %c0_19 = arith.constant 0 : index
      %21 = vector.load %arg5[%c0_18, %c0_19] : memref<1x32xf32, #tpu.memory_space<vmem>>, vector<1x32xf32>
      %22 = vector.broadcast %21 : vector<1x32xf32> to vector<2x32xf32>
      %23 = arith.mulf %20, %22 : vector<2x32xf32>
      %cst_20 = arith.constant dense<0.000000e+00> : vector<2xf32>
      %24 = vector.multi_reduction <add>, %23, %cst_20 [1] : vector<2x32xf32> to vector<2xf32>
      %25 = vector.shape_cast %24 : vector<2xf32> to vector<2x1xf32>
      %c0_21 = arith.constant 0 : index
      %c0_22 = arith.constant 0 : index
      %26 = vector.load %arg6[%c0_21, %c0_22] : memref<1x1xf32, #tpu.memory_space<vmem>>, vector<1x1xf32>
      %27 = vector.broadcast %26 : vector<1x1xf32> to vector<2x1xf32>
      %28 = arith.addf %25, %27 : vector<2x1xf32>
      %29 = arith.negf %28 : vector<2x1xf32>
      %30 = math.exp %29 : vector<2x1xf32>
      %cst_23 = arith.constant 1.000000e+00 : f32
      %31 = vector.broadcast %cst_23 : f32 to vector<2x1xf32>
      %32 = arith.addf %31, %30 : vector<2x1xf32>
      %33 = arith.divf %31, %32 : vector<2x1xf32>
      %c0_24 = arith.constant 0 : index
      %c0_25 = arith.constant 0 : index
      %34 = vector.load %arg7[%c0_24, %c0_25] : memref<2x1xf32, #tpu.memory_space<vmem>>, vector<2x1xf32>
      tpu.vector_store %arg7[%c0_24, %c0_25], %33 {strides = array<i32>} : memref<2x1xf32, #tpu.memory_space<vmem>>, vector<2x1xf32>,
    } else {
    }
    return
  }
  func.func @transform_0(%arg0: i32, %arg1: i32) -> (i32, i32, i32) {
    %c0_i32 = arith.constant 0 : i32
    %c0_i32_0 = arith.constant 0 : i32
    return %arg0, %c0_i32, %arg1 : i32, i32, i32
  }
  func.func @transform_1(%arg0: i32, %arg1: i32) -> (i32, i32) {
    %c0_i32 = arith.constant 0 : i32
    %c0_i32_0 = arith.constant 0 : i32
    %c0_i32_1 = arith.constant 0 : i32
    return %c0_i32, %c0_i32_0 : i32, i32
  }
  func.func @transform_2(%arg0: i32, %arg1: i32) -> (i32, i32) {
    %c0_i32 = arith.constant 0 : i32
    %c0_i32_0 = arith.constant 0 : i32
    %c0_i32_1 = arith.constant 0 : i32
    return %c0_i32, %c0_i32_0 : i32, i32
  }
  func.func @transform_3(%arg0: i32, %arg1: i32) -> (i32, i32) {
    %c0_i32 = arith.constant 0 : i32
    %c0_i32_0 = arith.constant 0 : i32
    %c0_i32_1 = arith.constant 0 : i32
    return %c0_i32, %c0_i32_0 : i32, i32
  }
  func.func @transform_4(%arg0: i32, %arg1: i32) -> (i32, i32) {
    %c0_i32 = arith.constant 0 : i32
    %c0_i32_0 = arith.constant 0 : i32
    %c0_i32_1 = arith.constant 0 : i32
    return %c0_i32, %c0_i32_0 : i32, i32
  }
  func.func @transform_5(%arg0: i32, %arg1: i32) -> (i32, i32) {
    %c0_i32 = arith.constant 0 : i32
    %c0_i32_0 = arith.constant 0 : i32
    return %arg0, %c0_i32 : i32, i32
  }
}

</mosaic_0001>

<llo_original>
// kernel: tpu_custom_call.1
$region0: #{tpu_custom_call.1}
  #allocation0 [shape = 'u32[]', space=smem, size = 0x4, offset = 0x4, fixed_abs, tag = 'smem constant byte address 0x4 - core index']
  #allocation1 [shape = 'u32[144,128]{1,0:T(1,128)}', space=vmem, size = 0x12000, scoped, tag = 'internal scratch']
  #allocation2 [shape = 'f32[2,4]{1,0:T(2,128)}', space=vmem, size = 0x400, scoped, tag = 'scratch operand']
  #allocation3 [shape = 'f32[1,1]{1,0:T(1,128)S(1)}', space=vmem, size = 0x200, scoped, tag = 'scoped memory for tpu_custom_call.1']
  %s0 = inlined_call_operand.hbm [shape: f32[2,4,256], index: 0, kind: input, shape index: {}]
  %s1 = inlined_call_operand.vmem [shape: f32[4,32], index: 1, kind: input, shape index: {}]
  %s2 = inlined_call_operand.vmem [shape: f32[1,32], index: 2, kind: input, shape index: {}]
  %s3 = inlined_call_operand.vmem [shape: f32[1,32], index: 3, kind: input, shape index: {}]
  %s4 = inlined_call_operand.<no memory space> [shape: f32[1,1], index: 4, kind: input, shape index: {}]
  %s5 = inlined_call_operand.vmem [shape: f32[2,1], index: 5, kind: output, shape index: {}]
  %s6 = sld [smem:[#allocation0]]
  $region42: #{tpu_custom_call.1} parent=0
    _
  %s8 = ssub.s32 1, %s6
  %s9 = scalar_select 0, %s8, %s6
  %v10 = vstv %s4
  %11 = vst [vmem:[#allocation3] sm:$0x1] %v10
  $region1: #{tpu_custom_call.1} parent=0
    #allocation4 [shape = 'u8[8192]{0}', space=vmem, size = 0x2000, scoped, tag = 'input window, operand 0, single buffered']
    #allocation5 [shape = 's32[1]{0}', space=sflag, size = 0x4, scoped, tag = 'scoped memory for tpu_custom_call.1']
    %12 = vsyncpa [#allocation5], 0
    // Predicated region
    $region2: #{tpu_custom_call.1} parent=1 // pred_check
      _
    $region3: #{tpu_custom_call.1} parent=1 // pred_check_branch
      %14 = sbr.rel (0) target = $region5
    $region4: #{tpu_custom_call.1} parent=1 // pred_region
      %s16 = ssub.s32 256, 256
      %17 = vsyncadd [#allocation5], %s16
      %s18 = sshll.u32 [#allocation4], 4
      %s19 = int_to_ptr.vmem [resolvable:$true] %s18
      %24 = dma.hbm_to_vmem [thread:$0]  %s0, 256, %s19, [#allocation5], 128, 128, 8
    $region5: #{tpu_custom_call.1} parent=1 // pred_fallthru
      _
    // Predicated region
    $region6: #{tpu_custom_call.1} parent=1 // pred_check
      _
    $region7: #{tpu_custom_call.1} parent=1 // pred_check_branch
      %26 = sbr.rel (0) target = $region9
    $region8: #{tpu_custom_call.1} parent=1 // pred_region
      _
    $region9: #{tpu_custom_call.1} parent=1 // pred_fallthru
      _
    // Predicated region
    $region10: #{tpu_custom_call.1} parent=1 // pred_check
      _
    $region11: #{tpu_custom_call.1} parent=1 // pred_check_branch
      %28 = sbr.rel (0) target = $region13
    $region12: #{tpu_custom_call.1} parent=1 // pred_region
      _
    $region13: #{tpu_custom_call.1} parent=1 // pred_fallthru
      _
    // Predicated region
    $region14: #{tpu_custom_call.1} parent=1 // pred_check
      _
    $region15: #{tpu_custom_call.1} parent=1 // pred_check_branch
      %30 = sbr.rel (0) target = $region17
    $region16: #{tpu_custom_call.1} parent=1 // pred_region
      _
    $region17: #{tpu_custom_call.1} parent=1 // pred_fallthru
      _
    // Predicated region
    $region18: #{tpu_custom_call.1} parent=1 // pred_check
      _
    $region19: #{tpu_custom_call.1} parent=1 // pred_check_branch
      %32 = sbr.rel (0) target = $region21
    $region20: #{tpu_custom_call.1} parent=1 // pred_region
      _
    $region21: #{tpu_custom_call.1} parent=1 // pred_fallthru
      _
    // Predicated region
    $region22: #{tpu_custom_call.1} parent=1 // pred_check
      _
    $region23: #{tpu_custom_call.1} parent=1 // pred_check_branch
      %34 = sbr.rel (0) target = $region25
    $region24: #{tpu_custom_call.1} parent=1 // pred_region
      %35 = dma.done [#allocation5], 256
    $region25: #{tpu_custom_call.1} parent=1 // pred_fallthru
      _
    %p36 = scmp.eq.s32.totalorder 0, 0
    // Predicated region
    $region26: #{tpu_custom_call.1} parent=1 // pred_check
      %p37 = pneg %p36
    $region27: #{tpu_custom_call.1} parent=1 // pred_check_branch
      %39 = sbr.rel (%p37) target = $region29
    $region28: #{tpu_custom_call.1} parent=1 // pred_region
      %vm40 = vcmask 25600
      %41 = vst.msk [vmem:[#allocation2] sm:$0x3] %vm40, 0.0
    $region29: #{tpu_custom_call.1} parent=1 // pred_fallthru
      _
    %v42 = vld [vmem:[#allocation4] sm:$0xff]
    %v43 = vld [vmem:[#allocation4 + $0x8] sm:$0xff]
    %v44 = vld [vmem:[#allocation2] sm:$0x3]
    %v47 = vcombine.high %v42, %v42
    %v48 = vcombine.high %v43, %v43
    %vm51 = vcmask 1043456
    %v52 = vsel %vm51, %v42, 0.0
    %v53 = vsel %vm51, %v47, 0.0
    %v54 = vadd.f32 %v52, %v53
    %55 = vadd.xlane.f32.xlu0 %v54
    %v56 = vpop.xlane.xlu0 %55
    %v57 = vsel %vm51, %v43, 0.0
    %v58 = vsel %vm51, %v48, 0.0
    %v59 = vadd.f32 %v57, %v58
    %60 = vadd.xlane.f32.xlu0 %v59
    %v61 = vpop.xlane.xlu0 %60
    %v64 = vlaneseq
    %v65 = vand.u32 %v64, 127
    %v66 = vlaneseq
    %v67 = vshrl.u32 %v66, 7
    %v68 = vsub.s32 %v65, %v67
    %v69 = vrot.slane %v56, %v68
    %v70 = vlaneseq
    %v71 = vshrl.u32 %v70, 7
    %v72 = vsub.s32 %v65, %v71
    %v73 = vrot.slane %v61, %v72
    %vm74 = vcmask 1041409
    %v75 = vsel %vm74, %v73, %v69
    %v77 = vadd.f32 %v44, %v75
    %vm78 = vcmask 25600
    %79 = vst.msk [vmem:[#allocation2] sm:$0x3] %vm78, %v77
    // Predicated region
    $region30: #{tpu_custom_call.1} parent=1 // pred_check
      %p80 = pneg %p36
    $region31: #{tpu_custom_call.1} parent=1 // pred_check_branch
      %82 = sbr.rel (%p80) target = $region33
    $region32: #{tpu_custom_call.1} parent=1 // pred_region
      %v83 = vld [vmem:[#allocation2] sm:$0x3]
      %v84 = vmul.f32 %v83, 0.00390625
      %v85 = vld [vmem:[%s1] sm:$0xf]
      %v86 = vld [vmem:[%s2] sm:$0x1]
      %v88 = vlaneseq
      %v89 = vshrl.u32 %v88, 7
      %v90 = vsub.s32 0, %v89
      %v91 = vrot.slane %v86, %v90
      %vm93 = vcmask 31744
      %v95 = vsel %vm93, %v84, 0
      %v98 = vsel %vm51, %v85, 0
      %100 = vmatprep.subr.mxu0 0.0
      %101 = vmatpush1.msra.mxu0 %v98
      %102 = vmatprep.subr.mxu0 0.0
      %103 = vmatpush1.msra.mxu0 0.0
      %104 = vmatprep.subr.mxu0 0.0
      %105 = vmatpush1.msra.mxu0 0.0
      %106 = vmatprep.subr.mxu0 0.0
      %107 = vmatpush1.msra.mxu0 0.0
      %108 = vmatprep.subr.mxu0 0.0
      %109 = vmatpush1.msra.mxu0 0.0
      %110 = vmatprep.subr.mxu0 0.0
      %111 = vmatpush1.msra.mxu0 0.0
      %112 = vmatprep.subr.mxu0 0.0
      %113 = vmatpush1.msra.mxu0 0.0
      %114 = vmatprep.subr.mxu0 0.0
      %115 = vmatpush1.msra.mxu0 0.0
      %116 = vmatprep.subr.mxu0 0.0
      %117 = vmatpush1.msra.mxu0 0.0
      %118 = vmatprep.subr.mxu0 0.0
      %119 = vmatpush1.msra.mxu0 0.0
      %120 = vmatprep.subr.mxu0 0.0
      %121 = vmatpush1.msra.mxu0 0.0
      %122 = vmatprep.subr.mxu0 0.0
      %123 = vmatpush1.msra.mxu0 0.0
      %124 = vmatprep.subr.mxu0 0.0
      %125 = vmatpush1.msra.mxu0 0.0
      %126 = vmatprep.subr.mxu0 0.0
      %127 = vmatpush1.msra.mxu0 0.0
      %128 = vmatprep.subr.mxu0 0.0
      %129 = vmatpush1.msra.mxu0 0.0
      %130 = vmatprep.subr.mxu0 0.0
      %131 = vmatpush1.msra.mxu0 0.0
      %132 = vmatprep.subr.mxu0 0.0
      %133 = vmatpush1.msra.mxu0 0.0
      %134 = vmatprep.subr.mxu0 0.0
      %135 = vmatpush1.msra.mxu0 0.0
      %136 = vmatprep.subr.mxu0 0.0
      %137 = vmatpush1.msra.mxu0 0.0
      %138 = vmatprep.subr.mxu0 0.0
      %139 = vmatpush1.msra.mxu0 0.0
      %140 = vmatprep.subr.mxu0 0.0
      %141 = vmatpush1.msra.mxu0 0.0
      %142 = vmatprep.subr.mxu0 0.0
      %143 = vmatpush1.msra.mxu0 0.0
      %144 = vmatprep.subr.mxu0 0.0
      %145 = vmatpush1.msra.mxu0 0.0
      %146 = vmatprep.subr.mxu0 0.0
      %147 = vmatpush1.msra.mxu0 0.0
      %148 = vmatprep.subr.mxu0 0.0
      %149 = vmatpush1.msra.mxu0 0.0
      %150 = vmatprep.subr.mxu0 0.0
      %151 = vmatpush1.msra.mxu0 0.0
      %152 = vmatprep.subr.mxu0 0.0
      %153 = vmatpush1.msra.mxu0 0.0
      %154 = vmatprep.subr.mxu0 0.0
      %155 = vmatpush1.msra.mxu0 0.0
      %156 = vmatprep.subr.mxu0 0.0
      %157 = vmatpush1.msra.mxu0 0.0
      %158 = vmatprep.subr.mxu0 0.0
      %159 = vmatpush1.msra.mxu0 0.0
      %160 = vmatprep.subr.mxu0 0.0
      %161 = vmatpush1.msra.mxu0 0.0
      %162 = vmatprep.subr.mxu0 0.0
      %163 = vmatpush1.msra.mxu0 0.0
      %164 = vmatprep.mubr.f32.mxu0 0.0
      %165 = vmatmul.mubr.f32.gmra.mrb[0].mxu0 %v95
      %v166 = vpop.f32.mrb[0].mxu0
      %v167 = vadd.f32 %v91, %v166
      %v168 = vpop.f32.mrb[0].mxu0
      %169 = vdwg.mxu0
      %v170 = vmax.f32 %v167, 0.0
      %v171 = vld [vmem:[%s3] sm:$0x1]
      %v173 = vlaneseq
      %v174 = vshrl.u32 %v173, 7
      %v175 = vsub.s32 0, %v174
      %v176 = vrot.slane %v171, %v175
      %v178 = vmul.f32 %v170, %v176
      %vm179 = vcmask 254976
      %v180 = vsel %vm179, %v178, 0.0
      %181 = vadd.xlane.f32.xlu0 %v180
      %v182 = vpop.xlane.xlu0 %181
      %v183 = vld [vmem:[#allocation3] sm:$0x1]
      %v185 = vlaneseq
      %v186 = vshrl.u32 %v185, 7
      %v187 = vsub.s32 0, %v186
      %v188 = vrot.slane %v183, %v187
      %v190 = vadd.f32 %v182, %v188
      %v191 = vxor.u32 %v190, 2147483648
      %v192 = vmul.f32 %v191, 1.442695
      %v193 = vpow.pop %v192
      %v194 = vadd.f32 %v193, 1.0
      %v195 = vrcp.pop %v194
      %v196 = vmul.f32 1.0, %v195
      %vm197 = vcmask 1024
      %198 = vst.msk [vmem:[%s5] sm:$0x3] %vm197, %v196
    $region33: #{tpu_custom_call.1} parent=1 // pred_fallthru
      _
    // Predicated region
    $region34: #{tpu_custom_call.1} parent=1 // pred_check
      _
    $region35: #{tpu_custom_call.1} parent=1 // pred_check_branch
      %200 = sbr.rel (0) target = $region37
    $region36: #{tpu_custom_call.1} parent=1 // pred_region
      _
    $region37: #{tpu_custom_call.1} parent=1 // pred_fallthru
      _
    // Predicated region
    $region38: #{tpu_custom_call.1} parent=1 // pred_check
      _
    $region39: #{tpu_custom_call.1} parent=1 // pred_check_branch
      %202 = sbr.rel (0) target = $region41
    $region40: #{tpu_custom_call.1} parent=1 // pred_region
      _
    $region41: #{tpu_custom_call.1} parent=1 // pred_fallthru
      _
    %203 = vsyncpa [#allocation5], 1

</llo_original>
